<compile_context>
chip_gen: v5e
topology: v5e:2x2
jax: 0.10.0
libtpu: 0.0.40
codegen_flags: <defaults>
</compile_context>

<pallas_src>
import jax
import jax.numpy as jnp
from jax.experimental import pallas as pl
from jax.experimental.pallas import tpu as pltpu

INPUT_DIM = 1
HIDDEN_DIM = 64
OUTPUT_DIM = 1
NUM_LAYERS = 4          # number of hidden Linear(64,64) layers
DEFAULT_TILE_B = 1024   # batch elements per grid step (multiple of 128, lanes)


def _silu(x):
    # sigmoid(x) = 0.5*(tanh(0.5*x) + 1): one EUP transcendental (no divide).
    return x * (0.5 * jnp.tanh(0.5 * x) + 0.5)


def mlp_kernel(x_ref, w1_ref, b1_ref, whT_ref, bh_ref, w2_ref, b2_ref, o_ref):
    # Shapes (batch-in-lanes):
    #   x_ref  : (1, TILE_B)            lane-dense input row
    #   w1_ref : (64, 1)                fc1 weight column
    #   b1_ref : (64, 1)                fc1 bias column
    #   whT_ref: (L, 64, 64)            hidden weights, (out, in) per layer
    #   bh_ref : (L, 64, 1)             hidden bias columns
    #   w2_ref : (64, 1)                fc2 weight column
    #   b2_ref : (1, 1)                 fc2 bias
    #   o_ref  : (1, TILE_B)            lane-dense output row

    # fc1: degenerate K=1 matmul -> VPU broadcast multiply. h: (64, TILE_B).
    h = _silu(w1_ref[...] * x_ref[...] + b1_ref[...])

    # Hidden 64x64 layers: statically unrolled; z = W @ h keeps the batch in
    # lanes, so the MXU result tile is full lane width (N = TILE_B).
    for i in range(NUM_LAYERS):
        z = jnp.dot(whT_ref[i], h, preferred_element_type=jnp.float32)
        h = _silu(z + bh_ref[i])

    # fc2: N=1 output -> elementwise multiply + sublane (axis=0) reduction on
    # the XLU instead of a 1-column MXU matmul. Result: (1, TILE_B), lane-dense.
    out = jnp.sum(w2_ref[...] * h, axis=0, keepdims=True) + b2_ref[...]
    o_ref[...] = out.astype(o_ref.dtype)


def feedforward_nn(x, params, tile_b=DEFAULT_TILE_B):
    """x: (batch, INPUT_DIM) float32 -> (batch, OUTPUT_DIM) float32."""
    w1, b1, wh, bh, w2, b2 = params
    batch = x.shape[0]

    # Lane tile: multiple of 128, no larger than the (128-padded) batch.
    padded128 = ((batch + 127) // 128) * 128
    tb = max(128, min((tile_b // 128) * 128, padded128))
    # Ensure >=2 grid steps when the batch allows it so v7x's second TC gets work.
    if padded128 >= 2 * 128:
        half = (((padded128 + 1) // 2 + 127) // 128) * 128
        tb = min(tb, half)

    num_tiles = -(-batch // tb)
    padded = num_tiles * tb

    # Present x as a single lane-dense row (1, padded); padded tail is zeros.
    x_row = jnp.pad(x.reshape(batch), (0, padded - batch)).reshape(1, padded)

    # Re-present weights for the batch-in-lanes formulation.
    w1_col = w1.reshape(HIDDEN_DIM, 1)                 # (1,64)  -> (64,1)
    b1_col = b1.reshape(HIDDEN_DIM, 1)                 # (1,64)  -> (64,1)
    whT = wh.transpose(0, 2, 1)                        # (L,in,out) -> (L,out,in)
    bh_col = bh.reshape(NUM_LAYERS, HIDDEN_DIM, 1)     # (L,1,64) -> (L,64,1)
    w2_col = w2.reshape(HIDDEN_DIM, 1)                 # already a column
    b2_sc = b2.reshape(1, 1)

    out_row = pl.pallas_call(
        mlp_kernel,
        out_shape=jax.ShapeDtypeStruct((1, padded), jnp.float32),
        grid=(num_tiles,),
        in_specs=[
            pl.BlockSpec((1, tb), lambda i: (0, i)),                               # x row tile
            pl.BlockSpec((HIDDEN_DIM, 1), lambda i: (0, 0)),                       # w1 col
            pl.BlockSpec((HIDDEN_DIM, 1), lambda i: (0, 0)),                       # b1 col
            pl.BlockSpec((NUM_LAYERS, HIDDEN_DIM, HIDDEN_DIM), lambda i: (0, 0, 0)),  # whT
            pl.BlockSpec((NUM_LAYERS, HIDDEN_DIM, 1), lambda i: (0, 0, 0)),        # bh cols
            pl.BlockSpec((HIDDEN_DIM, 1), lambda i: (0, 0)),                       # w2 col
            pl.BlockSpec((1, 1), lambda i: (0, 0)),                                # b2
        ],
        out_specs=pl.BlockSpec((1, tb), lambda i: (0, i)),
        compiler_params=pltpu.CompilerParams(
            dimension_semantics=("parallel",),   # megacore sharding on v7x
        ),
    )(x_row, w1_col, b1_col, whT, bh_col, w2_col, b2_sc)

    return out_row[0, :batch].reshape(batch, OUTPUT_DIM)


def init_params(key):
    """Deterministic init mimicking PyTorch nn.Linear default U(-1/sqrt(fan_in), +)."""
    ks = jax.random.split(key, 6)

    def uniform(k, shape, fan_in):
        bound = 1.0 / jnp.sqrt(float(fan_in))
        return jax.random.uniform(k, shape, jnp.float32, -bound, bound)

    w1 = uniform(ks[0], (INPUT_DIM, HIDDEN_DIM), INPUT_DIM)
    b1 = uniform(ks[1], (1, HIDDEN_DIM), INPUT_DIM)
    wh = uniform(ks[2], (NUM_LAYERS, HIDDEN_DIM, HIDDEN_DIM), HIDDEN_DIM)
    bh = uniform(ks[3], (NUM_LAYERS, 1, HIDDEN_DIM), HIDDEN_DIM)
    w2 = uniform(ks[4], (HIDDEN_DIM, OUTPUT_DIM), HIDDEN_DIM)
    b2 = uniform(ks[5], (1, OUTPUT_DIM), HIDDEN_DIM)
    return (w1, b1, wh, bh, w2, b2)


def reference_forward(x, params):
    """Pure-JAX reference matching the PyTorch forward pass."""
    w1, b1, wh, bh, w2, b2 = params
    h = jax.nn.silu(x @ w1 + b1)
    for i in range(NUM_LAYERS):
        h = jax.nn.silu(h @ wh[i] + bh[i])
    return h @ w2 + b2


if __name__ == "__main__":
    key = jax.random.PRNGKey(0)
    pkey, xkey = jax.random.split(key)
    params = init_params(pkey)

    # Small example consistent with the module: (batch, 1) scalar inputs.
    batch = 8
    x = jax.random.normal(xkey, (batch, INPUT_DIM), dtype=jnp.float32)

    out = feedforward_nn(x, params)
    out = jax.block_until_ready(out)

    ref = reference_forward(x, params)
    assert out.shape == (batch, OUTPUT_DIM)
    # tanh-based sigmoid vs exp-based reference: agree well within 1e-4.
    assert jnp.allclose(out, ref, atol=1e-4, rtol=1e-4), (out, ref)

    # Also exercise the padded / multi-tile path (batch not a tile multiple).
    x2 = jax.random.normal(xkey, (300, INPUT_DIM), dtype=jnp.float32)
    out2 = jax.block_until_ready(feedforward_nn(x2, params, tile_b=128))
    ref2 = reference_forward(x2, params)
    assert out2.shape == (300, OUTPUT_DIM)
    assert jnp.allclose(out2, ref2, atol=1e-4, rtol=1e-4)

    print("KERNEL_OK")
</pallas_src>

<mosaic_0001>
module attributes {stable_mosaic.version = 11 : i64} {
  func.func @mlp_kernel(%arg0: i32, %arg1: memref<1x128xf32, #tpu.memory_space<vmem>>, %arg2: memref<64x1xf32, #tpu.memory_space<vmem>>, %arg3: memref<64x1xf32, #tpu.memory_space<vmem>>, %arg4: memref<4x64x64xf32, #tpu.memory_space<vmem>>, %arg5: memref<4x64x1xf32, #tpu.memory_space<vmem>>, %arg6: memref<64x1xf32, #tpu.memory_space<vmem>>, %arg7: memref<1x1xf32, #tpu.memory_space<vmem>>, %arg8: memref<1x128xf32, #tpu.memory_space<vmem>>) attributes {dimension_semantics = [#tpu.dimension_semantics<parallel>], iteration_bounds = array<i64: 1>, scalar_prefetch = 0 : i64, scratch_operands = 0 : i64, tpu.core_type = #tpu.core_type<tc>, window_params = [{transform_indices = @transform_0, window_bounds = array<i64: 1, 128>}, {pipeline_mode = #tpu.pipeline_mode<synchronous>, transform_indices = @transform_1, window_bounds = array<i64: 64, 1>}, {pipeline_mode = #tpu.pipeline_mode<synchronous>, transform_indices = @transform_2, window_bounds = array<i64: 64, 1>}, {pipeline_mode = #tpu.pipeline_mode<synchronous>, transform_indices = @transform_3, window_bounds = array<i64: 4, 64, 64>}, {pipeline_mode = #tpu.pipeline_mode<synchronous>, transform_indices = @transform_4, window_bounds = array<i64: 4, 64, 1>}, {pipeline_mode = #tpu.pipeline_mode<synchronous>, transform_indices = @transform_5, window_bounds = array<i64: 64, 1>}, {pipeline_mode = #tpu.pipeline_mode<synchronous>, transform_indices = @transform_6, window_bounds = array<i64: 1, 1>}, {transform_indices = @transform_7, window_bounds = array<i64: 1, 128>}]} {
    %c0 = arith.constant 0 : index
    %c0_0 = arith.constant 0 : index
    %0 = vector.load %arg2[%c0, %c0_0] : memref<64x1xf32, #tpu.memory_space<vmem>>, vector<64x1xf32>
    %c0_1 = arith.constant 0 : index
    %c0_2 = arith.constant 0 : index
    %1 = vector.load %arg1[%c0_1, %c0_2] : memref<1x128xf32, #tpu.memory_space<vmem>>, vector<1x128xf32>
    %2 = vector.broadcast %0 : vector<64x1xf32> to vector<64x128xf32>
    %3 = vector.broadcast %1 : vector<1x128xf32> to vector<64x128xf32>
    %4 = arith.mulf %2, %3 : vector<64x128xf32>
    %c0_3 = arith.constant 0 : index
    %c0_4 = arith.constant 0 : index
    %5 = vector.load %arg3[%c0_3, %c0_4] : memref<64x1xf32, #tpu.memory_space<vmem>>, vector<64x1xf32>
    %6 = vector.broadcast %5 : vector<64x1xf32> to vector<64x128xf32>
    %7 = arith.addf %4, %6 : vector<64x128xf32>
    %cst = arith.constant 5.000000e-01 : f32
    %8 = vector.broadcast %cst : f32 to vector<64x128xf32>
    %9 = arith.mulf %8, %7 : vector<64x128xf32>
    %10 = math.tanh %9 : vector<64x128xf32>
    %cst_5 = arith.constant 5.000000e-01 : f32
    %11 = vector.broadcast %cst_5 : f32 to vector<64x128xf32>
    %12 = arith.mulf %11, %10 : vector<64x128xf32>
    %cst_6 = arith.constant 5.000000e-01 : f32
    %13 = vector.broadcast %cst_6 : f32 to vector<64x128xf32>
    %14 = arith.addf %12, %13 : vector<64x128xf32>
    %15 = arith.mulf %7, %14 : vector<64x128xf32>
    %c0_7 = arith.constant 0 : index
    %c0_8 = arith.constant 0 : index
    %c0_9 = arith.constant 0 : index
    %16 = vector.load %arg4[%c0_7, %c0_8, %c0_9] : memref<4x64x64xf32, #tpu.memory_space<vmem>>, vector<1x64x64xf32>
    %17 = vector.shape_cast %16 : vector<1x64x64xf32> to vector<64x64xf32>
    %cst_10 = arith.constant dense<0.000000e+00> : vector<64x128xf32>
    %18 = tpu.matmul %17, %15, %cst_10 {dimension_numbers = #tpu.dot_dimension_numbers<[1], [0], [0], [1], [0, 0, 1, 1], [], []>} : vector<64x64xf32>, vector<64x128xf32>, vector<64x128xf32> -> vector<64x128xf32>
    %c0_11 = arith.constant 0 : index
    %c0_12 = arith.constant 0 : index
    %c0_13 = arith.constant 0 : index
    %19 = vector.load %arg5[%c0_11, %c0_12, %c0_13] : memref<4x64x1xf32, #tpu.memory_space<vmem>>, vector<1x64x1xf32>
    %20 = vector.shape_cast %19 : vector<1x64x1xf32> to vector<64x1xf32>
    %21 = vector.broadcast %20 : vector<64x1xf32> to vector<64x128xf32>
    %22 = arith.addf %18, %21 : vector<64x128xf32>
    %cst_14 = arith.constant 5.000000e-01 : f32
    %23 = vector.broadcast %cst_14 : f32 to vector<64x128xf32>
    %24 = arith.mulf %23, %22 : vector<64x128xf32>
    %25 = math.tanh %24 : vector<64x128xf32>
    %cst_15 = arith.constant 5.000000e-01 : f32
    %26 = vector.broadcast %cst_15 : f32 to vector<64x128xf32>
    %27 = arith.mulf %26, %25 : vector<64x128xf32>
    %cst_16 = arith.constant 5.000000e-01 : f32
    %28 = vector.broadcast %cst_16 : f32 to vector<64x128xf32>
    %29 = arith.addf %27, %28 : vector<64x128xf32>
    %30 = arith.mulf %22, %29 : vector<64x128xf32>
    %c1 = arith.constant 1 : index
    %c0_17 = arith.constant 0 : index
    %c0_18 = arith.constant 0 : index
    %31 = vector.load %arg4[%c1, %c0_17, %c0_18] : memref<4x64x64xf32, #tpu.memory_space<vmem>>, vector<1x64x64xf32>
    %32 = vector.shape_cast %31 : vector<1x64x64xf32> to vector<64x64xf32>
    %cst_19 = arith.constant dense<0.000000e+00> : vector<64x128xf32>
    %33 = tpu.matmul %32, %30, %cst_19 {dimension_numbers = #tpu.dot_dimension_numbers<[1], [0], [0], [1], [0, 0, 1, 1], [], []>} : vector<64x64xf32>, vector<64x128xf32>, vector<64x128xf32> -> vector<64x128xf32>
    %c1_20 = arith.constant 1 : index
    %c0_21 = arith.constant 0 : index
    %c0_22 = arith.constant 0 : index
    %34 = vector.load %arg5[%c1_20, %c0_21, %c0_22] : memref<4x64x1xf32, #tpu.memory_space<vmem>>, vector<1x64x1xf32>
    %35 = vector.shape_cast %34 : vector<1x64x1xf32> to vector<64x1xf32>
    %36 = vector.broadcast %35 : vector<64x1xf32> to vector<64x128xf32>
    %37 = arith.addf %33, %36 : vector<64x128xf32>
    %cst_23 = arith.constant 5.000000e-01 : f32
    %38 = vector.broadcast %cst_23 : f32 to vector<64x128xf32>
    %39 = arith.mulf %38, %37 : vector<64x128xf32>
    %40 = math.tanh %39 : vector<64x128xf32>
    %cst_24 = arith.constant 5.000000e-01 : f32
    %41 = vector.broadcast %cst_24 : f32 to vector<64x128xf32>
    %42 = arith.mulf %41, %40 : vector<64x128xf32>
    %cst_25 = arith.constant 5.000000e-01 : f32
    %43 = vector.broadcast %cst_25 : f32 to vector<64x128xf32>
    %44 = arith.addf %42, %43 : vector<64x128xf32>
    %45 = arith.mulf %37, %44 : vector<64x128xf32>
    %c2 = arith.constant 2 : index
    %c0_26 = arith.constant 0 : index
    %c0_27 = arith.constant 0 : index
    %46 = vector.load %arg4[%c2, %c0_26, %c0_27] : memref<4x64x64xf32, #tpu.memory_space<vmem>>, vector<1x64x64xf32>
    %47 = vector.shape_cast %46 : vector<1x64x64xf32> to vector<64x64xf32>
    %cst_28 = arith.constant dense<0.000000e+00> : vector<64x128xf32>
    %48 = tpu.matmul %47, %45, %cst_28 {dimension_numbers = #tpu.dot_dimension_numbers<[1], [0], [0], [1], [0, 0, 1, 1], [], []>} : vector<64x64xf32>, vector<64x128xf32>, vector<64x128xf32> -> vector<64x128xf32>
    %c2_29 = arith.constant 2 : index
    %c0_30 = arith.constant 0 : index
    %c0_31 = arith.constant 0 : index
    %49 = vector.load %arg5[%c2_29, %c0_30, %c0_31] : memref<4x64x1xf32, #tpu.memory_space<vmem>>, vector<1x64x1xf32>
    %50 = vector.shape_cast %49 : vector<1x64x1xf32> to vector<64x1xf32>
    %51 = vector.broadcast %50 : vector<64x1xf32> to vector<64x128xf32>
    %52 = arith.addf %48, %51 : vector<64x128xf32>
    %cst_32 = arith.constant 5.000000e-01 : f32
    %53 = vector.broadcast %cst_32 : f32 to vector<64x128xf32>
    %54 = arith.mulf %53, %52 : vector<64x128xf32>
    %55 = math.tanh %54 : vector<64x128xf32>
    %cst_33 = arith.constant 5.000000e-01 : f32
    %56 = vector.broadcast %cst_33 : f32 to vector<64x128xf32>
    %57 = arith.mulf %56, %55 : vector<64x128xf32>
    %cst_34 = arith.constant 5.000000e-01 : f32
    %58 = vector.broadcast %cst_34 : f32 to vector<64x128xf32>
    %59 = arith.addf %57, %58 : vector<64x128xf32>
    %60 = arith.mulf %52, %59 : vector<64x128xf32>
    %c3 = arith.constant 3 : index
    %c0_35 = arith.constant 0 : index
    %c0_36 = arith.constant 0 : index
    %61 = vector.load %arg4[%c3, %c0_35, %c0_36] : memref<4x64x64xf32, #tpu.memory_space<vmem>>, vector<1x64x64xf32>
    %62 = vector.shape_cast %61 : vector<1x64x64xf32> to vector<64x64xf32>
    %cst_37 = arith.constant dense<0.000000e+00> : vector<64x128xf32>
    %63 = tpu.matmul %62, %60, %cst_37 {dimension_numbers = #tpu.dot_dimension_numbers<[1], [0], [0], [1], [0, 0, 1, 1], [], []>} : vector<64x64xf32>, vector<64x128xf32>, vector<64x128xf32> -> vector<64x128xf32>
    %c3_38 = arith.constant 3 : index
    %c0_39 = arith.constant 0 : index
    %c0_40 = arith.constant 0 : index
    %64 = vector.load %arg5[%c3_38, %c0_39, %c0_40] : memref<4x64x1xf32, #tpu.memory_space<vmem>>, vector<1x64x1xf32>
    %65 = vector.shape_cast %64 : vector<1x64x1xf32> to vector<64x1xf32>
    %66 = vector.broadcast %65 : vector<64x1xf32> to vector<64x128xf32>
    %67 = arith.addf %63, %66 : vector<64x128xf32>
    %cst_41 = arith.constant 5.000000e-01 : f32
    %68 = vector.broadcast %cst_41 : f32 to vector<64x128xf32>
    %69 = arith.mulf %68, %67 : vector<64x128xf32>
    %70 = math.tanh %69 : vector<64x128xf32>
    %cst_42 = arith.constant 5.000000e-01 : f32
    %71 = vector.broadcast %cst_42 : f32 to vector<64x128xf32>
    %72 = arith.mulf %71, %70 : vector<64x128xf32>
    %cst_43 = arith.constant 5.000000e-01 : f32
    %73 = vector.broadcast %cst_43 : f32 to vector<64x128xf32>
    %74 = arith.addf %72, %73 : vector<64x128xf32>
    %75 = arith.mulf %67, %74 : vector<64x128xf32>
    %c0_44 = arith.constant 0 : index
    %c0_45 = arith.constant 0 : index
    %76 = vector.load %arg6[%c0_44, %c0_45] : memref<64x1xf32, #tpu.memory_space<vmem>>, vector<64x1xf32>
    %77 = vector.broadcast %76 : vector<64x1xf32> to vector<64x128xf32>
    %78 = arith.mulf %77, %75 : vector<64x128xf32>
    %cst_46 = arith.constant dense<0.000000e+00> : vector<128xf32>
    %79 = vector.multi_reduction <add>, %78, %cst_46 [0] : vector<64x128xf32> to vector<128xf32>
    %80 = vector.shape_cast %79 : vector<128xf32> to vector<1x128xf32>
    %c0_47 = arith.constant 0 : index
    %c0_48 = arith.constant 0 : index
    %81 = vector.load %arg7[%c0_47, %c0_48] : memref<1x1xf32, #tpu.memory_space<vmem>>, vector<1x1xf32>
    %82 = vector.broadcast %81 : vector<1x1xf32> to vector<1x128xf32>
    %83 = arith.addf %80, %82 : vector<1x128xf32>
    %c0_49 = arith.constant 0 : index
    %c0_50 = arith.constant 0 : index
    %84 = vector.load %arg8[%c0_49, %c0_50] : memref<1x128xf32, #tpu.memory_space<vmem>>, vector<1x128xf32>
    tpu.vector_store %arg8[%c0_49, %c0_50], %83 {strides = array<i32>} : memref<1x128xf32, #tpu.memory_space<vmem>>, vector<1x128xf32>,
    return
  }
  func.func @transform_0(%arg0: i32) -> (i32, i32) {
    %c0_i32 = arith.constant 0 : i32
    %c0_i32_0 = arith.constant 0 : i32
    return %c0_i32, %arg0 : i32, i32
  }
  func.func @transform_1(%arg0: i32) -> (i32, i32) {
    %c0_i32 = arith.constant 0 : i32
    %c0_i32_0 = arith.constant 0 : i32
    %c0_i32_1 = arith.constant 0 : i32
    return %c0_i32, %c0_i32_0 : i32, i32
  }
  func.func @transform_2(%arg0: i32) -> (i32, i32) {
    %c0_i32 = arith.constant 0 : i32
    %c0_i32_0 = arith.constant 0 : i32
    %c0_i32_1 = arith.constant 0 : i32
    return %c0_i32, %c0_i32_0 : i32, i32
  }
  func.func @transform_3(%arg0: i32) -> (i32, i32, i32) {
    %c0_i32 = arith.constant 0 : i32
    %c0_i32_0 = arith.constant 0 : i32
    %c0_i32_1 = arith.constant 0 : i32
    %c0_i32_2 = arith.constant 0 : i32
    return %c0_i32, %c0_i32_0, %c0_i32_1 : i32, i32, i32
  }
  func.func @transform_4(%arg0: i32) -> (i32, i32, i32) {
    %c0_i32 = arith.constant 0 : i32
    %c0_i32_0 = arith.constant 0 : i32
    %c0_i32_1 = arith.constant 0 : i32
    %c0_i32_2 = arith.constant 0 : i32
    return %c0_i32, %c0_i32_0, %c0_i32_1 : i32, i32, i32
  }
  func.func @transform_5(%arg0: i32) -> (i32, i32) {
    %c0_i32 = arith.constant 0 : i32
    %c0_i32_0 = arith.constant 0 : i32
    %c0_i32_1 = arith.constant 0 : i32
    return %c0_i32, %c0_i32_0 : i32, i32
  }
  func.func @transform_6(%arg0: i32) -> (i32, i32) {
    %c0_i32 = arith.constant 0 : i32
    %c0_i32_0 = arith.constant 0 : i32
    %c0_i32_1 = arith.constant 0 : i32
    return %c0_i32, %c0_i32_0 : i32, i32
  }
  func.func @transform_7(%arg0: i32) -> (i32, i32) {
    %c0_i32 = arith.constant 0 : i32
    %c0_i32_0 = arith.constant 0 : i32
    return %c0_i32, %arg0 : i32, i32
  }
}

</mosaic_0001>

<llo_original>
// kernel: tpu_custom_call.1
$region0: #{tpu_custom_call.1}
  #allocation0 [shape = 'u32[]', space=smem, size = 0x4, offset = 0x4, fixed_abs, tag = 'smem constant byte address 0x4 - core index']
  #allocation1 [shape = 'u32[72,128]{1,0:T(1,128)}', space=vmem, size = 0x9000, scoped, tag = 'internal scratch']
  #allocation2 [shape = 'f32[1,1]{1,0:T(1,128)S(1)}', space=vmem, size = 0x200, scoped, tag = 'scoped memory for tpu_custom_call.1']
  %s0 = inlined_call_operand.vmem [shape: f32[1,128], index: 0, kind: input, shape index: {}]
  %s1 = inlined_call_operand.vmem [shape: f32[64,1], index: 1, kind: input, shape index: {}]
  %s2 = inlined_call_operand.vmem [shape: f32[64,1], index: 2, kind: input, shape index: {}]
  %s3 = inlined_call_operand.vmem [shape: f32[4,64,64], index: 3, kind: input, shape index: {}]
  %s4 = inlined_call_operand.vmem [shape: f32[4,64,1], index: 4, kind: input, shape index: {}]
  %s5 = inlined_call_operand.vmem [shape: f32[64,1], index: 5, kind: input, shape index: {}]
  %s6 = inlined_call_operand.<no memory space> [shape: f32[1,1], index: 6, kind: input, shape index: {}]
  %s7 = inlined_call_operand.hbm [shape: f32[1,128], index: 7, kind: output, shape index: {}]
  %s8 = sld [smem:[#allocation0]]
  $region38: #{tpu_custom_call.1} parent=0
    _
  %s10 = ssub.s32 1, %s8
  %s11 = scalar_select 0, %s10, %s8
  %v12 = vstv %s6
  %13 = vst [vmem:[#allocation2] sm:$0x1] %v12
  $region1: #{tpu_custom_call.1} parent=0
    #allocation3 [shape = 'u8[512]{0}', space=vmem, size = 0x400, scoped, tag = 'output window, operand 0, single buffered']
    #allocation4 [shape = 's32[1]{0}', space=sflag, size = 0x4, scoped, tag = 'scoped memory for tpu_custom_call.1']
    %14 = vsyncpa [#allocation4], 0
    // Predicated region
    $region2: #{tpu_custom_call.1} parent=1 // pred_check
      _
    $region3: #{tpu_custom_call.1} parent=1 // pred_check_branch
      %16 = sbr.rel (0) target = $region5
    $region4: #{tpu_custom_call.1} parent=1 // pred_region
      _
    $region5: #{tpu_custom_call.1} parent=1 // pred_fallthru
      _
    // Predicated region
    $region6: #{tpu_custom_call.1} parent=1 // pred_check
      _
    $region7: #{tpu_custom_call.1} parent=1 // pred_check_branch
      %18 = sbr.rel (0) target = $region9
    $region8: #{tpu_custom_call.1} parent=1 // pred_region
      _
    $region9: #{tpu_custom_call.1} parent=1 // pred_fallthru
      _
    // Predicated region
    $region10: #{tpu_custom_call.1} parent=1 // pred_check
      _
    $region11: #{tpu_custom_call.1} parent=1 // pred_check_branch
      %20 = sbr.rel (0) target = $region13
    $region12: #{tpu_custom_call.1} parent=1 // pred_region
      _
    $region13: #{tpu_custom_call.1} parent=1 // pred_fallthru
      _
    // Predicated region
    $region14: #{tpu_custom_call.1} parent=1 // pred_check
      _
    $region15: #{tpu_custom_call.1} parent=1 // pred_check_branch
      %22 = sbr.rel (0) target = $region17
    $region16: #{tpu_custom_call.1} parent=1 // pred_region
      _
    $region17: #{tpu_custom_call.1} parent=1 // pred_fallthru
      _
    // Predicated region
    $region18: #{tpu_custom_call.1} parent=1 // pred_check
      _
    $region19: #{tpu_custom_call.1} parent=1 // pred_check_branch
      %24 = sbr.rel (0) target = $region21
    $region20: #{tpu_custom_call.1} parent=1 // pred_region
      _
    $region21: #{tpu_custom_call.1} parent=1 // pred_fallthru
      _
    // Predicated region
    $region22: #{tpu_custom_call.1} parent=1 // pred_check
      _
    $region23: #{tpu_custom_call.1} parent=1 // pred_check_branch
      %26 = sbr.rel (0) target = $region25
    $region24: #{tpu_custom_call.1} parent=1 // pred_region
      _
    $region25: #{tpu_custom_call.1} parent=1 // pred_fallthru
      _
    // Predicated region
    $region26: #{tpu_custom_call.1} parent=1 // pred_check
      _
    $region27: #{tpu_custom_call.1} parent=1 // pred_check_branch
      %28 = sbr.rel (0) target = $region29
    $region28: #{tpu_custom_call.1} parent=1 // pred_region
      _
    $region29: #{tpu_custom_call.1} parent=1 // pred_fallthru
      _
    %v29 = vld [vmem:[%s1] sm:$0xff]
    %v30 = vld [vmem:[%s1 + $0x8] sm:$0xff]
    %v31 = vld [vmem:[%s1 + $0x10] sm:$0xff]
    %v32 = vld [vmem:[%s1 + $0x18] sm:$0xff]
    %v33 = vld [vmem:[%s1 + $0x20] sm:$0xff]
    %v34 = vld [vmem:[%s1 + $0x28] sm:$0xff]
    %v35 = vld [vmem:[%s1 + $0x30] sm:$0xff]
    %v36 = vld [vmem:[%s1 + $0x38] sm:$0xff]
    %v37 = vld [vmem:[%s0] sm:$0x1]
    %39 = vset.pattern.permute.xlu0 0
    %40 = vperm.xlu0 %39, %v29
    %v41 = vpop.permute.xlu0 %40
    %44 = vset.pattern.permute.xlu0 0
    %45 = vperm.xlu0 %44, %v30
    %v46 = vpop.permute.xlu0 %45
    %49 = vset.pattern.permute.xlu0 0
    %50 = vperm.xlu0 %49, %v31
    %v51 = vpop.permute.xlu0 %50
    %54 = vset.pattern.permute.xlu0 0
    %55 = vperm.xlu0 %54, %v32
    %v56 = vpop.permute.xlu0 %55
    %59 = vset.pattern.permute.xlu0 0
    %60 = vperm.xlu0 %59, %v33
    %v61 = vpop.permute.xlu0 %60
    %64 = vset.pattern.permute.xlu0 0
    %65 = vperm.xlu0 %64, %v34
    %v66 = vpop.permute.xlu0 %65
    %69 = vset.pattern.permute.xlu0 0
    %70 = vperm.xlu0 %69, %v35
    %v71 = vpop.permute.xlu0 %70
    %74 = vset.pattern.permute.xlu0 0
    %75 = vperm.xlu0 %74, %v36
    %v76 = vpop.permute.xlu0 %75
    %v79 = vperm.slane %v37, 0
    %v81 = vmul.f32 %v41, %v79
    %v82 = vmul.f32 %v46, %v79
    %v83 = vmul.f32 %v51, %v79
    %v84 = vmul.f32 %v56, %v79
    %v85 = vmul.f32 %v61, %v79
    %v86 = vmul.f32 %v66, %v79
    %v87 = vmul.f32 %v71, %v79
    %v88 = vmul.f32 %v76, %v79
    %v89 = vld [vmem:[%s2] sm:$0xff]
    %v90 = vld [vmem:[%s2 + $0x8] sm:$0xff]
    %v91 = vld [vmem:[%s2 + $0x10] sm:$0xff]
    %v92 = vld [vmem:[%s2 + $0x18] sm:$0xff]
    %v93 = vld [vmem:[%s2 + $0x20] sm:$0xff]
    %v94 = vld [vmem:[%s2 + $0x28] sm:$0xff]
    %v95 = vld [vmem:[%s2 + $0x30] sm:$0xff]
    %v96 = vld [vmem:[%s2 + $0x38] sm:$0xff]
    %98 = vset.pattern.permute.xlu0 0
    %99 = vperm.xlu0 %98, %v89
    %v100 = vpop.permute.xlu0 %99
    %103 = vset.pattern.permute.xlu0 0
    %104 = vperm.xlu0 %103, %v90
    %v105 = vpop.permute.xlu0 %104
    %108 = vset.pattern.permute.xlu0 0
    %109 = vperm.xlu0 %108, %v91
    %v110 = vpop.permute.xlu0 %109
    %113 = vset.pattern.permute.xlu0 0
    %114 = vperm.xlu0 %113, %v92
    %v115 = vpop.permute.xlu0 %114
    %118 = vset.pattern.permute.xlu0 0
    %119 = vperm.xlu0 %118, %v93
    %v120 = vpop.permute.xlu0 %119
    %123 = vset.pattern.permute.xlu0 0
    %124 = vperm.xlu0 %123, %v94
    %v125 = vpop.permute.xlu0 %124
    %128 = vset.pattern.permute.xlu0 0
    %129 = vperm.xlu0 %128, %v95
    %v130 = vpop.permute.xlu0 %129
    %133 = vset.pattern.permute.xlu0 0
    %134 = vperm.xlu0 %133, %v96
    %v135 = vpop.permute.xlu0 %134
    %v137 = vadd.f32 %v81, %v100
    %v138 = vadd.f32 %v82, %v105
    %v139 = vadd.f32 %v83, %v110
    %v140 = vadd.f32 %v84, %v115
    %v141 = vadd.f32 %v85, %v120
    %v142 = vadd.f32 %v86, %v125
    %v143 = vadd.f32 %v87, %v130
    %v144 = vadd.f32 %v88, %v135
    %v145 = vmul.f32 %v137, 0.5
    %v146 = vmul.f32 %v138, 0.5
    %v147 = vmul.f32 %v139, 0.5
    %v148 = vmul.f32 %v140, 0.5
    %v149 = vmul.f32 %v141, 0.5
    %v150 = vmul.f32 %v142, 0.5
    %v151 = vmul.f32 %v143, 0.5
    %v152 = vmul.f32 %v144, 0.5
    %v153 = vtanh.pop %v145
    %v154 = vtanh.pop %v146
    %v155 = vtanh.pop %v147
    %v156 = vtanh.pop %v148
    %v157 = vtanh.pop %v149
    %v158 = vtanh.pop %v150
    %v159 = vtanh.pop %v151
    %v160 = vtanh.pop %v152
    %v161 = vmul.f32 %v153, 0.5
    %v162 = vmul.f32 %v154, 0.5
    %v163 = vmul.f32 %v155, 0.5
    %v164 = vmul.f32 %v156, 0.5
    %v165 = vmul.f32 %v157, 0.5
    %v166 = vmul.f32 %v158, 0.5
    %v167 = vmul.f32 %v159, 0.5
    %v168 = vmul.f32 %v160, 0.5
    %v169 = vadd.f32 %v161, 0.5
    %v170 = vadd.f32 %v162, 0.5
    %v171 = vadd.f32 %v163, 0.5
    %v172 = vadd.f32 %v164, 0.5
    %v173 = vadd.f32 %v165, 0.5
    %v174 = vadd.f32 %v166, 0.5
    %v175 = vadd.f32 %v167, 0.5
    %v176 = vadd.f32 %v168, 0.5
    %v177 = vmul.f32 %v137, %v169
    %v178 = vmul.f32 %v138, %v170
    %v179 = vmul.f32 %v139, %v171
    %v180 = vmul.f32 %v140, %v172
    %v181 = vmul.f32 %v141, %v173
    %v182 = vmul.f32 %v142, %v174
    %v183 = vmul.f32 %v143, %v175
    %v184 = vmul.f32 %v144, %v176
    %v185 = vld [vmem:[%s3] sm:$0xff]
    %v186 = vld [vmem:[%s3 + $0x8] sm:$0xff]
    %v187 = vld [vmem:[%s3 + $0x10] sm:$0xff]
    %v188 = vld [vmem:[%s3 + $0x18] sm:$0xff]
    %v189 = vld [vmem:[%s3 + $0x20] sm:$0xff]
    %v190 = vld [vmem:[%s3 + $0x28] sm:$0xff]
    %v191 = vld [vmem:[%s3 + $0x30] sm:$0xff]
    %v192 = vld [vmem:[%s3 + $0x38] sm:$0xff]
    %v193 = vld [vmem:[%s4] sm:$0xff]
    %v194 = vld [vmem:[%s4 + $0x8] sm:$0xff]
    %v195 = vld [vmem:[%s4 + $0x10] sm:$0xff]
    %v196 = vld [vmem:[%s4 + $0x18] sm:$0xff]
    %v197 = vld [vmem:[%s4 + $0x20] sm:$0xff]
    %v198 = vld [vmem:[%s4 + $0x28] sm:$0xff]
    %v199 = vld [vmem:[%s4 + $0x30] sm:$0xff]
    %v200 = vld [vmem:[%s4 + $0x38] sm:$0xff]
    %202 = vset.pattern.permute.xlu0 0
    %203 = vperm.xlu0 %202, %v193
    %v204 = vpop.permute.xlu0 %203
    %207 = vset.pattern.permute.xlu0 0
    %208 = vperm.xlu0 %207, %v194
    %v209 = vpop.permute.xlu0 %208
    %212 = vset.pattern.permute.xlu0 0
    %213 = vperm.xlu0 %212, %v195
    %v214 = vpop.permute.xlu0 %213
    %217 = vset.pattern.permute.xlu0 0
    %218 = vperm.xlu0 %217, %v196
    %v219 = vpop.permute.xlu0 %218
    %222 = vset.pattern.permute.xlu0 0
    %223 = vperm.xlu0 %222, %v197
    %v224 = vpop.permute.xlu0 %223
    %227 = vset.pattern.permute.xlu0 0
    %228 = vperm.xlu0 %227, %v198
    %v229 = vpop.permute.xlu0 %228
    %232 = vset.pattern.permute.xlu0 0
    %233 = vperm.xlu0 %232, %v199
    %v234 = vpop.permute.xlu0 %233
    %237 = vset.pattern.permute.xlu0 0
    %238 = vperm.xlu0 %237, %v200
    %v239 = vpop.permute.xlu0 %238
    %vm241 = vcmask 523264
    %v243 = vsel %vm241, %v185, 0
    %v246 = vsel %vm241, %v186, 0
    %v249 = vsel %vm241, %v187, 0
    %v252 = vsel %vm241, %v188, 0
    %v255 = vsel %vm241, %v189, 0
    %v258 = vsel %vm241, %v190, 0
    %v261 = vsel %vm241, %v191, 0
    %v264 = vsel %vm241, %v192, 0
    %266 = vmatpush.msra.mxu0 0.0
    %267 = vmatpush.msra.mxu0 0.0
    %268 = vmatpush.msra.mxu0 0.0
    %269 = vmatpush.msra.mxu0 0.0
    %270 = vmatpush.msra.mxu0 0.0
    %271 = vmatpush.msra.mxu0 0.0
    %272 = vmatpush.msra.mxu0 0.0
    %273 = vmatpush.msra.mxu0 0.0
    %274 = vmatpush.msra.mxu0 %v184
    %275 = vmatpush.msra.mxu0 %v183
    %276 = vmatpush.msra.mxu0 %v182
    %277 = vmatpush.msra.mxu0 %v181
    %278 = vmatpush.msra.mxu0 %v180
    %279 = vmatpush.msra.mxu0 %v179
    %280 = vmatpush.msra.mxu0 %v178
    %281 = vmatpush.msra.mxu0 %v177
    %282 = vmatmul.f32.gmra.mxu0 %v243
    %v283 = vpop.f32.mrf.mxu0
    %v284 = vadd.f32 %v204, %v283
    %285 = vmatmul.f32.gmra.mxu0 %v246
    %v286 = vpop.f32.mrf.mxu0
    %v287 = vadd.f32 %v209, %v286
    %288 = vmatmul.f32.gmra.mxu0 %v249
    %v289 = vpop.f32.mrf.mxu0
    %v290 = vadd.f32 %v214, %v289
    %291 = vmatmul.f32.gmra.mxu0 %v252
    %v292 = vpop.f32.mrf.mxu0
    %v293 = vadd.f32 %v219, %v292
    %294 = vmatmul.f32.gmra.mxu0 %v255
    %v295 = vpop.f32.mrf.mxu0
    %v296 = vadd.f32 %v224, %v295
    %297 = vmatmul.f32.gmra.mxu0 %v258
    %v298 = vpop.f32.mrf.mxu0
    %v299 = vadd.f32 %v229, %v298
    %300 = vmatmul.f32.gmra.mxu0 %v261
    %v301 = vpop.f32.mrf.mxu0
    %v302 = vadd.f32 %v234, %v301
    %303 = vmatmul.f32.gmra.mxu0 %v264
    %v304 = vpop.f32.mrf.mxu0
    %v305 = vadd.f32 %v239, %v304
    %306 = vdwg.mxu0
    %v307 = vmul.f32 %v284, 0.5
    %v308 = vmul.f32 %v287, 0.5
    %v309 = vmul.f32 %v290, 0.5
    %v310 = vmul.f32 %v293, 0.5
    %v311 = vmul.f32 %v296, 0.5
    %v312 = vmul.f32 %v299, 0.5
    %v313 = vmul.f32 %v302, 0.5
    %v314 = vmul.f32 %v305, 0.5
    %v315 = vtanh.pop %v307
    %v316 = vtanh.pop %v308
    %v317 = vtanh.pop %v309
    %v318 = vtanh.pop %v310
    %v319 = vtanh.pop %v311
    %v320 = vtanh.pop %v312
    %v321 = vtanh.pop %v313
    %v322 = vtanh.pop %v314
    %v323 = vmul.f32 %v315, 0.5
    %v324 = vmul.f32 %v316, 0.5
    %v325 = vmul.f32 %v317, 0.5
    %v326 = vmul.f32 %v318, 0.5
    %v327 = vmul.f32 %v319, 0.5
    %v328 = vmul.f32 %v320, 0.5
    %v329 = vmul.f32 %v321, 0.5
    %v330 = vmul.f32 %v322, 0.5
    %v331 = vadd.f32 %v323, 0.5
    %v332 = vadd.f32 %v324, 0.5
    %v333 = vadd.f32 %v325, 0.5
    %v334 = vadd.f32 %v326, 0.5
    %v335 = vadd.f32 %v327, 0.5
    %v336 = vadd.f32 %v328, 0.5
    %v337 = vadd.f32 %v329, 0.5
    %v338 = vadd.f32 %v330, 0.5
    %v339 = vmul.f32 %v284, %v331
    %v340 = vmul.f32 %v287, %v332
    %v341 = vmul.f32 %v290, %v333
    %v342 = vmul.f32 %v293, %v334
    %v343 = vmul.f32 %v296, %v335
    %v344 = vmul.f32 %v299, %v336
    %v345 = vmul.f32 %v302, %v337
    %v346 = vmul.f32 %v305, %v338
    %s347 = scalar_lea.vmem %s3, 64
    %v348 = vld [vmem:[%s347] sm:$0xff]
    %v349 = vld [vmem:[%s347 + $0x8] sm:$0xff]
    %v350 = vld [vmem:[%s347 + $0x10] sm:$0xff]
    %v351 = vld [vmem:[%s347 + $0x18] sm:$0xff]
    %v352 = vld [vmem:[%s347 + $0x20] sm:$0xff]
    %v353 = vld [vmem:[%s347 + $0x28] sm:$0xff]
    %v354 = vld [vmem:[%s347 + $0x30] sm:$0xff]
    %v355 = vld [vmem:[%s347 + $0x38] sm:$0xff]
    %s356 = scalar_lea.vmem %s4, 64
    %v357 = vld [vmem:[%s356] sm:$0xff]
    %v358 = vld [vmem:[%s356 + $0x8] sm:$0xff]
    %v359 = vld [vmem:[%s356 + $0x10] sm:$0xff]
    %v360 = vld [vmem:[%s356 + $0x18] sm:$0xff]
    %v361 = vld [vmem:[%s356 + $0x20] sm:$0xff]
    %v362 = vld [vmem:[%s356 + $0x28] sm:$0xff]
    %v363 = vld [vmem:[%s356 + $0x30] sm:$0xff]
    %v364 = vld [vmem:[%s356 + $0x38] sm:$0xff]
    %366 = vset.pattern.permute.xlu0 0
    %367 = vperm.xlu0 %366, %v357
    %v368 = vpop.permute.xlu0 %367
    %371 = vset.pattern.permute.xlu0 0
    %372 = vperm.xlu0 %371, %v358
    %v373 = vpop.permute.xlu0 %372
    %376 = vset.pattern.permute.xlu0 0
    %377 = vperm.xlu0 %376, %v359
    %v378 = vpop.permute.xlu0 %377
    %381 = vset.pattern.permute.xlu0 0
    %382 = vperm.xlu0 %381, %v360
    %v383 = vpop.permute.xlu0 %382
    %386 = vset.pattern.permute.xlu0 0
    %387 = vperm.xlu0 %386, %v361
    %v388 = vpop.permute.xlu0 %387
    %391 = vset.pattern.permute.xlu0 0
    %392 = vperm.xlu0 %391, %v362
    %v393 = vpop.permute.xlu0 %392
    %396 = vset.pattern.permute.xlu0 0
    %397 = vperm.xlu0 %396, %v363
    %v398 = vpop.permute.xlu0 %397
    %401 = vset.pattern.permute.xlu0 0
    %402 = vperm.xlu0 %401, %v364
    %v403 = vpop.permute.xlu0 %402
    %v406 = vsel %vm241, %v348, 0
    %v409 = vsel %vm241, %v349, 0
    %v412 = vsel %vm241, %v350, 0
    %v415 = vsel %vm241, %v351, 0
    %v418 = vsel %vm241, %v352, 0
    %v421 = vsel %vm241, %v353, 0
    %v424 = vsel %vm241, %v354, 0
    %v427 = vsel %vm241, %v355, 0
    %429 = vmatpush.msra.mxu0 0.0
    %430 = vmatpush.msra.mxu0 0.0
    %431 = vmatpush.msra.mxu0 0.0
    %432 = vmatpush.msra.mxu0 0.0
    %433 = vmatpush.msra.mxu0 0.0
    %434 = vmatpush.msra.mxu0 0.0
    %435 = vmatpush.msra.mxu0 0.0
    %436 = vmatpush.msra.mxu0 0.0
    %437 = vmatpush.msra.mxu0 %v346
    %438 = vmatpush.msra.mxu0 %v345
    %439 = vmatpush.msra.mxu0 %v344
    %440 = vmatpush.msra.mxu0 %v343
    %441 = vmatpush.msra.mxu0 %v342
    %442 = vmatpush.msra.mxu0 %v341
    %443 = vmatpush.msra.mxu0 %v340
    %444 = vmatpush.msra.mxu0 %v339
    %445 = vmatmul.f32.gmra.mxu0 %v406
    %v446 = vpop.f32.mrf.mxu0
    %v447 = vadd.f32 %v368, %v446
    %448 = vmatmul.f32.gmra.mxu0 %v409
    %v449 = vpop.f32.mrf.mxu0
    %v450 = vadd.f32 %v373, %v449
    %451 = vmatmul.f32.gmra.mxu0 %v412
    %v452 = vpop.f32.mrf.mxu0
    %v453 = vadd.f32 %v378, %v452
    %454 = vmatmul.f32.gmra.mxu0 %v415
    %v455 = vpop.f32.mrf.mxu0
    %v456 = vadd.f32 %v383, %v455
    %457 = vmatmul.f32.gmra.mxu0 %v418
    %v458 = vpop.f32.mrf.mxu0
    %v459 = vadd.f32 %v388, %v458
    %460 = vmatmul.f32.gmra.mxu0 %v421
    %v461 = vpop.f32.mrf.mxu0
    %v462 = vadd.f32 %v393, %v461
    %463 = vmatmul.f32.gmra.mxu0 %v424
    %v464 = vpop.f32.mrf.mxu0
    %v465 = vadd.f32 %v398, %v464
    %466 = vmatmul.f32.gmra.mxu0 %v427
    %v467 = vpop.f32.mrf.mxu0
    %v468 = vadd.f32 %v403, %v467
    %469 = vdwg.mxu0
    %v470 = vmul.f32 %v447, 0.5
    %v471 = vmul.f32 %v450, 0.5
    %v472 = vmul.f32 %v453, 0.5
    %v473 = vmul.f32 %v456, 0.5
    %v474 = vmul.f32 %v459, 0.5
    %v475 = vmul.f32 %v462, 0.5
    %v476 = vmul.f32 %v465, 0.5
    %v477 = vmul.f32 %v468, 0.5
    %v478 = vtanh.pop %v470
    %v479 = vtanh.pop %v471
    %v480 = vtanh.pop %v472
    %v481 = vtanh.pop %v473
    %v482 = vtanh.pop %v474
    %v483 = vtanh.pop %v475
    %v484 = vtanh.pop %v476
    %v485 = vtanh.pop %v477
    %v486 = vmul.f32 %v478, 0.5
    %v487 = vmul.f32 %v479, 0.5
    %v488 = vmul.f32 %v480, 0.5
    %v489 = vmul.f32 %v481, 0.5
    %v490 = vmul.f32 %v482, 0.5
    %v491 = vmul.f32 %v483, 0.5
    %v492 = vmul.f32 %v484, 0.5
    %v493 = vmul.f32 %v485, 0.5
    %v494 = vadd.f32 %v486, 0.5
    %v495 = vadd.f32 %v487, 0.5
    %v496 = vadd.f32 %v488, 0.5
    %v497 = vadd.f32 %v489, 0.5
    %v498 = vadd.f32 %v490, 0.5
    %v499 = vadd.f32 %v491, 0.5
    %v500 = vadd.f32 %v492, 0.5
    %v501 = vadd.f32 %v493, 0.5
    %v502 = vmul.f32 %v447, %v494
    %v503 = vmul.f32 %v450, %v495
    %v504 = vmul.f32 %v453, %v496
    %v505 = vmul.f32 %v456, %v497
    %v506 = vmul.f32 %v459, %v498
    %v507 = vmul.f32 %v462, %v499
    %v508 = vmul.f32 %v465, %v500
    %v509 = vmul.f32 %v468, %v501
    %s510 = scalar_lea.vmem %s3, 128
    %v511 = vld [vmem:[%s510] sm:$0xff]
    %v512 = vld [vmem:[%s510 + $0x8] sm:$0xff]
    %v513 = vld [vmem:[%s510 + $0x10] sm:$0xff]
    %v514 = vld [vmem:[%s510 + $0x18] sm:$0xff]
    %v515 = vld [vmem:[%s510 + $0x20] sm:$0xff]
    %v516 = vld [vmem:[%s510 + $0x28] sm:$0xff]
    %v517 = vld [vmem:[%s510 + $0x30] sm:$0xff]
    %v518 = vld [vmem:[%s510 + $0x38] sm:$0xff]
    %s519 = scalar_lea.vmem %s4, 128
    %v520 = vld [vmem:[%s519] sm:$0xff]
    %v521 = vld [vmem:[%s519 + $0x8] sm:$0xff]
    %v522 = vld [vmem:[%s519 + $0x10] sm:$0xff]
    %v523 = vld [vmem:[%s519 + $0x18] sm:$0xff]
    %v524 = vld [vmem:[%s519 + $0x20] sm:$0xff]
    %v525 = vld [vmem:[%s519 + $0x28] sm:$0xff]
    %v526 = vld [vmem:[%s519 + $0x30] sm:$0xff]
    %v527 = vld [vmem:[%s519 + $0x38] sm:$0xff]
    %529 = vset.pattern.permute.xlu0 0
    %530 = vperm.xlu0 %529, %v520
    %v531 = vpop.permute.xlu0 %530
    %534 = vset.pattern.permute.xlu0 0
    %535 = vperm.xlu0 %534, %v521
    %v536 = vpop.permute.xlu0 %535
    %539 = vset.pattern.permute.xlu0 0
    %540 = vperm.xlu0 %539, %v522
    %v541 = vpop.permute.xlu0 %540
    %544 = vset.pattern.permute.xlu0 0
    %545 = vperm.xlu0 %544, %v523
    %v546 = vpop.permute.xlu0 %545
    %549 = vset.pattern.permute.xlu0 0
    %550 = vperm.xlu0 %549, %v524
    %v551 = vpop.permute.xlu0 %550
    %554 = vset.pattern.permute.xlu0 0
    %555 = vperm.xlu0 %554, %v525
    %v556 = vpop.permute.xlu0 %555
    %559 = vset.pattern.permute.xlu0 0
    %560 = vperm.xlu0 %559, %v526
    %v561 = vpop.permute.xlu0 %560
    %564 = vset.pattern.permute.xlu0 0
    %565 = vperm.xlu0 %564, %v527
    %v566 = vpop.permute.xlu0 %565
    %v569 = vsel %vm241, %v511, 0
    %v572 = vsel %vm241, %v512, 0
    %v575 = vsel %vm241, %v513, 0
    %v578 = vsel %vm241, %v514, 0
    %v581 = vsel %vm241, %v515, 0
    %v584 = vsel %vm241, %v516, 0
    %v587 = vsel %vm241, %v517, 0
    %v590 = vsel %vm241, %v518, 0
    %592 = vmatpush.msra.mxu0 0.0
    %593 = vmatpush.msra.mxu0 0.0
    %594 = vmatpush.msra.mxu0 0.0
    %595 = vmatpush.msra.mxu0 0.0
    %596 = vmatpush.msra.mxu0 0.0
    %597 = vmatpush.msra.mxu0 0.0
    %598 = vmatpush.msra.mxu0 0.0
    %599 = vmatpush.msra.mxu0 0.0
    %600 = vmatpush.msra.mxu0 %v509
    %601 = vmatpush.msra.mxu0 %v508
    %602 = vmatpush.msra.mxu0 %v507
    %603 = vmatpush.msra.mxu0 %v506
    %604 = vmatpush.msra.mxu0 %v505
    %605 = vmatpush.msra.mxu0 %v504
    %606 = vmatpush.msra.mxu0 %v503
    %607 = vmatpush.msra.mxu0 %v502
    %608 = vmatmul.f32.gmra.mxu0 %v569
    %v609 = vpop.f32.mrf.mxu0
    %v610 = vadd.f32 %v531, %v609
    %611 = vmatmul.f32.gmra.mxu0 %v572
    %v612 = vpop.f32.mrf.mxu0
    %v613 = vadd.f32 %v536, %v612
    %614 = vmatmul.f32.gmra.mxu0 %v575
    %v615 = vpop.f32.mrf.mxu0
    %v616 = vadd.f32 %v541, %v615
    %617 = vmatmul.f32.gmra.mxu0 %v578
    %v618 = vpop.f32.mrf.mxu0
    %v619 = vadd.f32 %v546, %v618
    %620 = vmatmul.f32.gmra.mxu0 %v581
    %v621 = vpop.f32.mrf.mxu0
    %v622 = vadd.f32 %v551, %v621
    %623 = vmatmul.f32.gmra.mxu0 %v584
    %v624 = vpop.f32.mrf.mxu0
    %v625 = vadd.f32 %v556, %v624
    %626 = vmatmul.f32.gmra.mxu0 %v587
    %v627 = vpop.f32.mrf.mxu0
    %v628 = vadd.f32 %v561, %v627
    %629 = vmatmul.f32.gmra.mxu0 %v590
    %v630 = vpop.f32.mrf.mxu0
    %v631 = vadd.f32 %v566, %v630
    %632 = vdwg.mxu0
    %v633 = vmul.f32 %v610, 0.5
    %v634 = vmul.f32 %v613, 0.5
    %v635 = vmul.f32 %v616, 0.5
    %v636 = vmul.f32 %v619, 0.5
    %v637 = vmul.f32 %v622, 0.5
    %v638 = vmul.f32 %v625, 0.5
    %v639 = vmul.f32 %v628, 0.5
    %v640 = vmul.f32 %v631, 0.5
    %v641 = vtanh.pop %v633
    %v642 = vtanh.pop %v634
    %v643 = vtanh.pop %v635
    %v644 = vtanh.pop %v636
    %v645 = vtanh.pop %v637
    %v646 = vtanh.pop %v638
    %v647 = vtanh.pop %v639
    %v648 = vtanh.pop %v640
    %v649 = vmul.f32 %v641, 0.5
    %v650 = vmul.f32 %v642, 0.5
    %v651 = vmul.f32 %v643, 0.5
    %v652 = vmul.f32 %v644, 0.5
    %v653 = vmul.f32 %v645, 0.5
    %v654 = vmul.f32 %v646, 0.5
    %v655 = vmul.f32 %v647, 0.5
    %v656 = vmul.f32 %v648, 0.5
    %v657 = vadd.f32 %v649, 0.5
    %v658 = vadd.f32 %v650, 0.5
    %v659 = vadd.f32 %v651, 0.5
    %v660 = vadd.f32 %v652, 0.5
    %v661 = vadd.f32 %v653, 0.5
    %v662 = vadd.f32 %v654, 0.5
    %v663 = vadd.f32 %v655, 0.5
    %v664 = vadd.f32 %v656, 0.5
    %v665 = vmul.f32 %v610, %v657
    %v666 = vmul.f32 %v613, %v658
    %v667 = vmul.f32 %v616, %v659
    %v668 = vmul.f32 %v619, %v660
    %v669 = vmul.f32 %v622, %v661
    %v670 = vmul.f32 %v625, %v662
    %v671 = vmul.f32 %v628, %v663
    %v672 = vmul.f32 %v631, %v664
    %s673 = scalar_lea.vmem %s3, 192
    %v674 = vld [vmem:[%s673] sm:$0xff]
    %v675 = vld [vmem:[%s673 + $0x8] sm:$0xff]
    %v676 = vld [vmem:[%s673 + $0x10] sm:$0xff]
    %v677 = vld [vmem:[%s673 + $0x18] sm:$0xff]
    %v678 = vld [vmem:[%s673 + $0x20] sm:$0xff]
    %v679 = vld [vmem:[%s673 + $0x28] sm:$0xff]
    %v680 = vld [vmem:[%s673 + $0x30] sm:$0xff]
    %v681 = vld [vmem:[%s673 + $0x38] sm:$0xff]
    %s682 = scalar_lea.vmem %s4, 192
    %v683 = vld [vmem:[%s682] sm:$0xff]
    %v684 = vld [vmem:[%s682 + $0x8] sm:$0xff]
    %v685 = vld [vmem:[%s682 + $0x10] sm:$0xff]
    %v686 = vld [vmem:[%s682 + $0x18] sm:$0xff]
    %v687 = vld [vmem:[%s682 + $0x20] sm:$0xff]
    %v688 = vld [vmem:[%s682 + $0x28] sm:$0xff]
    %v689 = vld [vmem:[%s682 + $0x30] sm:$0xff]
    %v690 = vld [vmem:[%s682 + $0x38] sm:$0xff]
    %692 = vset.pattern.permute.xlu0 0
    %693 = vperm.xlu0 %692, %v683
    %v694 = vpop.permute.xlu0 %693
    %697 = vset.pattern.permute.xlu0 0
    %698 = vperm.xlu0 %697, %v684
    %v699 = vpop.permute.xlu0 %698
    %702 = vset.pattern.permute.xlu0 0
    %703 = vperm.xlu0 %702, %v685
    %v704 = vpop.permute.xlu0 %703
    %707 = vset.pattern.permute.xlu0 0
    %708 = vperm.xlu0 %707, %v686
    %v709 = vpop.permute.xlu0 %708
    %712 = vset.pattern.permute.xlu0 0
    %713 = vperm.xlu0 %712, %v687
    %v714 = vpop.permute.xlu0 %713
    %717 = vset.pattern.permute.xlu0 0
    %718 = vperm.xlu0 %717, %v688
    %v719 = vpop.permute.xlu0 %718
    %722 = vset.pattern.permute.xlu0 0
    %723 = vperm.xlu0 %722, %v689
    %v724 = vpop.permute.xlu0 %723
    %727 = vset.pattern.permute.xlu0 0
    %728 = vperm.xlu0 %727, %v690
    %v729 = vpop.permute.xlu0 %728
    %v732 = vsel %vm241, %v674, 0
    %v735 = vsel %vm241, %v675, 0
    %v738 = vsel %vm241, %v676, 0
    %v741 = vsel %vm241, %v677, 0
    %v744 = vsel %vm241, %v678, 0
    %v747 = vsel %vm241, %v679, 0
    %v750 = vsel %vm241, %v680, 0
    %v753 = vsel %vm241, %v681, 0
    %755 = vmatpush.msra.mxu0 0.0
    %756 = vmatpush.msra.mxu0 0.0
    %757 = vmatpush.msra.mxu0 0.0
    %758 = vmatpush.msra.mxu0 0.0
    %759 = vmatpush.msra.mxu0 0.0
    %760 = vmatpush.msra.mxu0 0.0
    %761 = vmatpush.msra.mxu0 0.0
    %762 = vmatpush.msra.mxu0 0.0
    %763 = vmatpush.msra.mxu0 %v672
    %764 = vmatpush.msra.mxu0 %v671
    %765 = vmatpush.msra.mxu0 %v670
    %766 = vmatpush.msra.mxu0 %v669
    %767 = vmatpush.msra.mxu0 %v668
    %768 = vmatpush.msra.mxu0 %v667
    %769 = vmatpush.msra.mxu0 %v666
    %770 = vmatpush.msra.mxu0 %v665
    %771 = vmatmul.f32.gmra.mxu0 %v732
    %v772 = vpop.f32.mrf.mxu0
    %v773 = vadd.f32 %v694, %v772
    %774 = vmatmul.f32.gmra.mxu0 %v735
    %v775 = vpop.f32.mrf.mxu0
    %v776 = vadd.f32 %v699, %v775
    %777 = vmatmul.f32.gmra.mxu0 %v738
    %v778 = vpop.f32.mrf.mxu0
    %v779 = vadd.f32 %v704, %v778
    %780 = vmatmul.f32.gmra.mxu0 %v741
    %v781 = vpop.f32.mrf.mxu0
    %v782 = vadd.f32 %v709, %v781
    %783 = vmatmul.f32.gmra.mxu0 %v744
    %v784 = vpop.f32.mrf.mxu0
    %v785 = vadd.f32 %v714, %v784
    %786 = vmatmul.f32.gmra.mxu0 %v747
    %v787 = vpop.f32.mrf.mxu0
    %v788 = vadd.f32 %v719, %v787
    %789 = vmatmul.f32.gmra.mxu0 %v750
    %v790 = vpop.f32.mrf.mxu0
    %v791 = vadd.f32 %v724, %v790
    %792 = vmatmul.f32.gmra.mxu0 %v753
    %v793 = vpop.f32.mrf.mxu0
    %v794 = vadd.f32 %v729, %v793
    %795 = vdwg.mxu0
    %v796 = vmul.f32 %v773, 0.5
    %v797 = vmul.f32 %v776, 0.5
    %v798 = vmul.f32 %v779, 0.5
    %v799 = vmul.f32 %v782, 0.5
    %v800 = vmul.f32 %v785, 0.5
    %v801 = vmul.f32 %v788, 0.5
    %v802 = vmul.f32 %v791, 0.5
    %v803 = vmul.f32 %v794, 0.5
    %v804 = vtanh.pop %v796
    %v805 = vtanh.pop %v797
    %v806 = vtanh.pop %v798
    %v807 = vtanh.pop %v799
    %v808 = vtanh.pop %v800
    %v809 = vtanh.pop %v801
    %v810 = vtanh.pop %v802
    %v811 = vtanh.pop %v803
    %v812 = vmul.f32 %v804, 0.5
    %v813 = vmul.f32 %v805, 0.5
    %v814 = vmul.f32 %v806, 0.5
    %v815 = vmul.f32 %v807, 0.5
    %v816 = vmul.f32 %v808, 0.5
    %v817 = vmul.f32 %v809, 0.5
    %v818 = vmul.f32 %v810, 0.5
    %v819 = vmul.f32 %v811, 0.5
    %v820 = vadd.f32 %v812, 0.5
    %v821 = vadd.f32 %v813, 0.5
    %v822 = vadd.f32 %v814, 0.5
    %v823 = vadd.f32 %v815, 0.5
    %v824 = vadd.f32 %v816, 0.5
    %v825 = vadd.f32 %v817, 0.5
    %v826 = vadd.f32 %v818, 0.5
    %v827 = vadd.f32 %v819, 0.5
    %v828 = vmul.f32 %v773, %v820
    %v829 = vmul.f32 %v776, %v821
    %v830 = vmul.f32 %v779, %v822
    %v831 = vmul.f32 %v782, %v823
    %v832 = vmul.f32 %v785, %v824
    %v833 = vmul.f32 %v788, %v825
    %v834 = vmul.f32 %v791, %v826
    %v835 = vmul.f32 %v794, %v827
    %v836 = vld [vmem:[%s5] sm:$0xff]
    %v837 = vld [vmem:[%s5 + $0x8] sm:$0xff]
    %v838 = vld [vmem:[%s5 + $0x10] sm:$0xff]
    %v839 = vld [vmem:[%s5 + $0x18] sm:$0xff]
    %v840 = vld [vmem:[%s5 + $0x20] sm:$0xff]
    %v841 = vld [vmem:[%s5 + $0x28] sm:$0xff]
    %v842 = vld [vmem:[%s5 + $0x30] sm:$0xff]
    %v843 = vld [vmem:[%s5 + $0x38] sm:$0xff]
    %845 = vset.pattern.permute.xlu0 0
    %846 = vperm.xlu0 %845, %v836
    %v847 = vpop.permute.xlu0 %846
    %850 = vset.pattern.permute.xlu0 0
    %851 = vperm.xlu0 %850, %v837
    %v852 = vpop.permute.xlu0 %851
    %855 = vset.pattern.permute.xlu0 0
    %856 = vperm.xlu0 %855, %v838
    %v857 = vpop.permute.xlu0 %856
    %860 = vset.pattern.permute.xlu0 0
    %861 = vperm.xlu0 %860, %v839
    %v862 = vpop.permute.xlu0 %861
    %865 = vset.pattern.permute.xlu0 0
    %866 = vperm.xlu0 %865, %v840
    %v867 = vpop.permute.xlu0 %866
    %870 = vset.pattern.permute.xlu0 0
    %871 = vperm.xlu0 %870, %v841
    %v872 = vpop.permute.xlu0 %871
    %875 = vset.pattern.permute.xlu0 0
    %876 = vperm.xlu0 %875, %v842
    %v877 = vpop.permute.xlu0 %876
    %880 = vset.pattern.permute.xlu0 0
    %881 = vperm.xlu0 %880, %v843
    %v882 = vpop.permute.xlu0 %881
    %v884 = vmul.f32 %v847, %v828
    %v885 = vmul.f32 %v852, %v829
    %v886 = vmul.f32 %v857, %v830
    %v887 = vmul.f32 %v862, %v831
    %v888 = vmul.f32 %v867, %v832
    %v889 = vmul.f32 %v872, %v833
    %v890 = vmul.f32 %v877, %v834
    %v891 = vmul.f32 %v882, %v835
    %v892 = vadd.f32 %v884, %v885
    %v893 = vadd.f32 %v892, %v886
    %v894 = vadd.f32 %v893, %v887
    %v895 = vadd.f32 %v894, %v888
    %v896 = vadd.f32 %v895, %v889
    %v897 = vadd.f32 %v896, %v890
    %v898 = vadd.f32 %v897, %v891
    %v899 = vrot.slane %v898, 4
    %v900 = vadd.f32 %v898, %v899
    %v901 = vrot.slane %v900, 2
    %v902 = vadd.f32 %v900, %v901
    %v903 = vrot.slane %v902, 1
    %v904 = vadd.f32 %v902, %v903
    %v905 = vld [vmem:[#allocation2] sm:$0x1]
    %907 = vset.pattern.permute.xlu0 0
    %908 = vperm.xlu0 %907, %v905
    %v909 = vpop.permute.xlu0 %908
    %v911 = vperm.slane %v909, 0
    %v912 = vadd.f32 %v904, %v911
    %913 = vst [vmem:[#allocation3] sm:$0x1] %v912
    // Predicated region
    $region30: #{tpu_custom_call.1} parent=1 // pred_check
      _
    $region31: #{tpu_custom_call.1} parent=1 // pred_check_branch
      %915 = sbr.rel (0) target = $region33
    $region32: #{tpu_custom_call.1} parent=1 // pred_region
      %917 = vsyncadd [#allocation4], 0
      %s919 = sshll.u32 [#allocation3], 4
      %s920 = int_to_ptr.vmem [resolvable:$true] %s919
      %s921 = sshll.u32 %s7, 4
      %s922 = int_to_ptr.hbm [resolvable:$true] %s921
      %924 = dma.vmem_to_hbm [thread:$0]  %s920, 16, %s922, [#allocation4]
    $region33: #{tpu_custom_call.1} parent=1 // pred_fallthru
      _
    // Predicated region
    $region34: #{tpu_custom_call.1} parent=1 // pred_check
      _
    $region35: #{tpu_custom_call.1} parent=1 // pred_check_branch
      %926 = sbr.rel (0) target = $region37
    $region36: #{tpu_custom_call.1} parent=1 // pred_region
      %928 = dma.done [#allocation4], 16
    $region37: #{tpu_custom_call.1} parent=1 // pred_fallthru
      _
    %929 = vsyncpa [#allocation4], 1

</llo_original>
